<compile_context>
chip_gen: v7x
topology: tpu7x:2x2x1
jax: 0.10.0
libtpu: 0.0.40
codegen_flags: <defaults>
</compile_context>

<pallas_src>
import jax
import jax.numpy as jnp
from jax.experimental import pallas as pl
from jax.experimental.pallas import tpu as pltpu

LANES = 128


def _round_up(n: int, m: int) -> int:
    return ((n + m - 1) // m) * m


def gmf_kernel(u_idx_ref, i_idx_ref, uid_t_ref, iid_t_ref, w_ref, o_ref):
    """One batch tile of the GMF forward.

    u_idx_ref, i_idx_ref : (1, TILE) int32   per-tile index chunks (lane-dense)
    uid_t_ref            : (D, U)    f32     user table, transposed, VMEM-resident
    iid_t_ref            : (D, I1)   f32     item table, transposed, VMEM-resident
    w_ref                : (D, 1)    f32     Linear(D, 1, bias=False) weight column
    o_ref                : (1, TILE) f32     lane-dense output block
    """
    n_u = uid_t_ref.shape[1]
    n_i = iid_t_ref.shape[1]
    tile = o_ref.shape[1]

    # In-kernel embedding gather: build (vocab, tile) one-hot selectors from the
    # index chunks and let the MXU pick table columns -> (D, tile) embeddings.
    # VMEM-resident tables => zero extra HBM traffic for the gather.
    u_sel = jnp.where(
        jax.lax.broadcasted_iota(jnp.int32, (n_u, tile), 0) == u_idx_ref[...],
        1.0, 0.0).astype(jnp.float32)
    i_sel = jnp.where(
        jax.lax.broadcasted_iota(jnp.int32, (n_i, tile), 0) == i_idx_ref[...],
        1.0, 0.0).astype(jnp.float32)

    emb_u = jnp.dot(uid_t_ref[...], u_sel, preferred_element_type=jnp.float32)
    emb_i = jnp.dot(iid_t_ref[...], i_sel, preferred_element_type=jnp.float32)

    # GMF elementwise product + Linear(D, 1, bias=False): VPU multiply with the
    # (D, 1) weight lane-broadcast, then a sublane reduce over D (XLU).
    prod = emb_u * emb_i * w_ref[...]                      # (D, tile)
    o_ref[...] = jnp.sum(prod, axis=0, keepdims=True)      # (1, tile), unmasked vst


def gmf_forward(x, uid_table, iid_table, w, *, tb=16384, min_tiles=2,
                vmem_limit_bytes=None):
    """x: [B, 2] int; uid_table: [U, D]; iid_table: [I+1, D]; w: [1, D] -> [B] f32."""
    B = x.shape[0]
    n_u, D = uid_table.shape
    n_i = iid_table.shape[0]

    # Lane-dense batch tile: multiple of 128 lanes; large by default to amortize
    # per-grid-step overhead, capped so the grid keeps >= min_tiles steps
    # (lets the "parallel" axis use both v7x TensorCores).
    tile = min(tb, _round_up(B, LANES))
    if min_tiles > 1:
        tile = min(tile, _round_up(pl.cdiv(B, min_tiles), LANES))
    tile = max(LANES, _round_up(tile, LANES))
    num_tiles = pl.cdiv(B, tile)
    bp = num_tiles * tile

    # Index chunks, zero-padded to the tile boundary (index 0 is always valid,
    # so tail rows are computed-then-discarded instead of reading garbage).
    u_idx = jnp.pad(x[:, 0].astype(jnp.int32), (0, bp - B)).reshape(1, bp)
    i_idx = jnp.pad(x[:, 1].astype(jnp.int32), (0, bp - B)).reshape(1, bp)

    # Parameter layout prep (tiny, once per call): tables transposed so the
    # batch axis lands on lanes inside the kernel; weight as a (D, 1) column.
    uid_t = uid_table.T.astype(jnp.float32)                # (D, U)
    iid_t = iid_table.T.astype(jnp.float32)                # (D, I+1)
    w_col = jnp.reshape(w, (D, 1)).astype(jnp.float32)     # (D, 1)

    # TODO(synk): for vocabularies too large to keep VMEM-resident, switch the
    # gather to tables in pl.BlockSpec(memory_space=pl.ANY) + double-buffered
    # per-row pltpu.make_async_copy DMAs driven by SMEM index chunks.

    flops = 2 * bp * D * (n_u + n_i) + 3 * bp * D
    bytes_accessed = (2 * bp + bp) * 4 + (n_u + n_i + 1) * D * 4

    out = pl.pallas_call(
        gmf_kernel,
        out_shape=jax.ShapeDtypeStruct((1, bp), jnp.float32),
        grid_spec=pltpu.PrefetchScalarGridSpec(
            num_scalar_prefetch=0,
            grid=(num_tiles,),
            in_specs=[
                pl.BlockSpec((1, tile), lambda i: (0, i)),    # uid index chunk
                pl.BlockSpec((1, tile), lambda i: (0, i)),    # iid index chunk
                pl.BlockSpec((D, n_u), lambda i: (0, 0)),     # uid table^T (resident)
                pl.BlockSpec((D, n_i), lambda i: (0, 0)),     # iid table^T (resident)
                pl.BlockSpec((D, 1), lambda i: (0, 0)),       # linear weight column
            ],
            out_specs=pl.BlockSpec((1, tile), lambda i: (0, i)),
        ),
        compiler_params=pltpu.CompilerParams(
            dimension_semantics=("parallel",),
            vmem_limit_bytes=vmem_limit_bytes,
        ),
        cost_estimate=pl.CostEstimate(
            flops=int(flops), transcendentals=0,
            bytes_accessed=int(bytes_accessed)),
    )(u_idx, i_idx, uid_t, iid_t, w_col)

    return out[0, :B]                                       # squeeze(1), drop padded tail


def gmf_reference(x, uid_table, iid_table, w):
    u = jnp.take(uid_table, x[:, 0], axis=0)
    i = jnp.take(iid_table, x[:, 1], axis=0)
    return jnp.sum(u * i * jnp.reshape(w, (1, -1)), axis=-1)


if __name__ == "__main__":
    uid_all, iid_all, emb_dim = 10, 20, 32

    key = jax.random.PRNGKey(0)
    k_uid, k_iid, k_w, k_xu, k_xi = jax.random.split(key, 5)

    # Deterministic parameter init (Embedding ~ N(0,1); Linear weight small uniform).
    uid_table = jax.random.normal(k_uid, (uid_all, emb_dim), dtype=jnp.float32)
    iid_table = jax.random.normal(k_iid, (iid_all + 1, emb_dim), dtype=jnp.float32)
    bound = 1.0 / emb_dim ** 0.5
    w = jax.random.uniform(k_w, (1, emb_dim), dtype=jnp.float32,
                           minval=-bound, maxval=bound)

    # Config 1: multi-step grid (min_tiles=2 -> two 256-lane tiles for B=300).
    B = 300
    uid_idx = jax.random.randint(k_xu, (B,), 0, uid_all, dtype=jnp.int32)
    iid_idx = jax.random.randint(k_xi, (B,), 0, iid_all + 1, dtype=jnp.int32)
    x = jnp.stack([uid_idx, iid_idx], axis=1)               # [B, 2]

    out = jax.block_until_ready(gmf_forward(x, uid_table, iid_table, w))
    ref = gmf_reference(x, uid_table, iid_table, w)
    assert out.shape == (B,)
    assert jnp.allclose(out, ref, atol=1e-5, rtol=1e-5)

    # Config 2: tiny batch -> single 128-lane tile.
    B2 = 8
    x2 = x[:B2]
    out2 = jax.block_until_ready(gmf_forward(x2, uid_table, iid_table, w))
    ref2 = gmf_reference(x2, uid_table, iid_table, w)
    assert out2.shape == (B2,)
    assert jnp.allclose(out2, ref2, atol=1e-5, rtol=1e-5)

    print("KERNEL_OK")
</pallas_src>

<mosaic_0001>
module attributes {stable_mosaic.version = 11 : i64} {
  func.func @gmf_kernel(%arg0: i32, %arg1: memref<1x256xi32, #tpu.memory_space<vmem>>, %arg2: memref<1x256xi32, #tpu.memory_space<vmem>>, %arg3: memref<32x10xf32, #tpu.memory_space<vmem>>, %arg4: memref<32x21xf32, #tpu.memory_space<vmem>>, %arg5: memref<32x1xf32, #tpu.memory_space<vmem>>, %arg6: memref<1x256xf32, #tpu.memory_space<vmem>>) attributes {dimension_semantics = [#tpu.dimension_semantics<parallel>], iteration_bounds = array<i64: 2>, scalar_prefetch = 0 : i64, scratch_operands = 0 : i64, tpu.core_type = #tpu.core_type<tc>, window_params = [{transform_indices = @transform_0, window_bounds = array<i64: 1, 256>}, {transform_indices = @transform_1, window_bounds = array<i64: 1, 256>}, {pipeline_mode = #tpu.pipeline_mode<synchronous>, transform_indices = @transform_2, window_bounds = array<i64: 32, 10>}, {pipeline_mode = #tpu.pipeline_mode<synchronous>, transform_indices = @transform_3, window_bounds = array<i64: 32, 21>}, {pipeline_mode = #tpu.pipeline_mode<synchronous>, transform_indices = @transform_4, window_bounds = array<i64: 32, 1>}, {transform_indices = @transform_5, window_bounds = array<i64: 1, 256>}]} {
    %0 = tpu.iota {dimensions = array<i32: 0>} : vector<10x256xi32>
    %c0 = arith.constant 0 : index
    %c0_0 = arith.constant 0 : index
    %1 = vector.load %arg1[%c0, %c0_0] : memref<1x256xi32, #tpu.memory_space<vmem>>, vector<1x256xi32>
    %2 = vector.broadcast %1 : vector<1x256xi32> to vector<10x256xi32>
    %3 = arith.cmpi eq, %0, %2 : vector<10x256xi32>
    %cst = arith.constant 1.000000e+00 : f32
    %cst_1 = arith.constant 0.000000e+00 : f32
    %4 = vector.broadcast %cst : f32 to vector<10x256xf32>
    %5 = vector.broadcast %cst_1 : f32 to vector<10x256xf32>
    %6 = arith.select %3, %4, %5 : vector<10x256xi1>, vector<10x256xf32>
    %7 = tpu.iota {dimensions = array<i32: 0>} : vector<21x256xi32>
    %c0_2 = arith.constant 0 : index
    %c0_3 = arith.constant 0 : index
    %8 = vector.load %arg2[%c0_2, %c0_3] : memref<1x256xi32, #tpu.memory_space<vmem>>, vector<1x256xi32>
    %9 = vector.broadcast %8 : vector<1x256xi32> to vector<21x256xi32>
    %10 = arith.cmpi eq, %7, %9 : vector<21x256xi32>
    %cst_4 = arith.constant 1.000000e+00 : f32
    %cst_5 = arith.constant 0.000000e+00 : f32
    %11 = vector.broadcast %cst_4 : f32 to vector<21x256xf32>
    %12 = vector.broadcast %cst_5 : f32 to vector<21x256xf32>
    %13 = arith.select %10, %11, %12 : vector<21x256xi1>, vector<21x256xf32>
    %c0_6 = arith.constant 0 : index
    %c0_7 = arith.constant 0 : index
    %14 = vector.load %arg3[%c0_6, %c0_7] : memref<32x10xf32, #tpu.memory_space<vmem>>, vector<32x10xf32>
    %cst_8 = arith.constant dense<0.000000e+00> : vector<32x256xf32>
    %15 = tpu.matmul %14, %6, %cst_8 {dimension_numbers = #tpu.dot_dimension_numbers<[1], [0], [0], [1], [0, 0, 1, 1], [], []>} : vector<32x10xf32>, vector<10x256xf32>, vector<32x256xf32> -> vector<32x256xf32>
    %c0_9 = arith.constant 0 : index
    %c0_10 = arith.constant 0 : index
    %16 = vector.load %arg4[%c0_9, %c0_10] : memref<32x21xf32, #tpu.memory_space<vmem>>, vector<32x21xf32>
    %cst_11 = arith.constant dense<0.000000e+00> : vector<32x256xf32>
    %17 = tpu.matmul %16, %13, %cst_11 {dimension_numbers = #tpu.dot_dimension_numbers<[1], [0], [0], [1], [0, 0, 1, 1], [], []>} : vector<32x21xf32>, vector<21x256xf32>, vector<32x256xf32> -> vector<32x256xf32>
    %18 = arith.mulf %15, %17 : vector<32x256xf32>
    %c0_12 = arith.constant 0 : index
    %c0_13 = arith.constant 0 : index
    %19 = vector.load %arg5[%c0_12, %c0_13] : memref<32x1xf32, #tpu.memory_space<vmem>>, vector<32x1xf32>
    %20 = vector.broadcast %19 : vector<32x1xf32> to vector<32x256xf32>
    %21 = arith.mulf %18, %20 : vector<32x256xf32>
    %cst_14 = arith.constant dense<0.000000e+00> : vector<256xf32>
    %22 = vector.multi_reduction <add>, %21, %cst_14 [0] : vector<32x256xf32> to vector<256xf32>
    %23 = vector.shape_cast %22 : vector<256xf32> to vector<1x256xf32>
    %c0_15 = arith.constant 0 : index
    %c0_16 = arith.constant 0 : index
    %24 = vector.load %arg6[%c0_15, %c0_16] : memref<1x256xf32, #tpu.memory_space<vmem>>, vector<1x256xf32>
    tpu.vector_store %arg6[%c0_15, %c0_16], %23 {strides = array<i32>} : memref<1x256xf32, #tpu.memory_space<vmem>>, vector<1x256xf32>,
    return
  }
  func.func @transform_0(%arg0: i32) -> (i32, i32) {
    %c0_i32 = arith.constant 0 : i32
    %c0_i32_0 = arith.constant 0 : i32
    return %c0_i32, %arg0 : i32, i32
  }
  func.func @transform_1(%arg0: i32) -> (i32, i32) {
    %c0_i32 = arith.constant 0 : i32
    %c0_i32_0 = arith.constant 0 : i32
    return %c0_i32, %arg0 : i32, i32
  }
  func.func @transform_2(%arg0: i32) -> (i32, i32) {
    %c0_i32 = arith.constant 0 : i32
    %c0_i32_0 = arith.constant 0 : i32
    %c0_i32_1 = arith.constant 0 : i32
    return %c0_i32, %c0_i32_0 : i32, i32
  }
  func.func @transform_3(%arg0: i32) -> (i32, i32) {
    %c0_i32 = arith.constant 0 : i32
    %c0_i32_0 = arith.constant 0 : i32
    %c0_i32_1 = arith.constant 0 : i32
    return %c0_i32, %c0_i32_0 : i32, i32
  }
  func.func @transform_4(%arg0: i32) -> (i32, i32) {
    %c0_i32 = arith.constant 0 : i32
    %c0_i32_0 = arith.constant 0 : i32
    %c0_i32_1 = arith.constant 0 : i32
    return %c0_i32, %c0_i32_0 : i32, i32
  }
  func.func @transform_5(%arg0: i32) -> (i32, i32) {
    %c0_i32 = arith.constant 0 : i32
    %c0_i32_0 = arith.constant 0 : i32
    return %c0_i32, %arg0 : i32, i32
  }
}

</mosaic_0001>

<llo_original>
// kernel: tpu_custom_call.1
$region0: #{tpu_custom_call.1}
  #allocation0 [shape = 'u32[]', space=smem, size = 0x4, offset = 0x4, fixed_abs, tag = 'smem constant byte address 0x4 - core index']
  #allocation1 [shape = 'u32[144,128]{1,0:T(1,128)}', space=vmem, size = 0x12000, scoped, tag = 'internal scratch']
  %s0 = inlined_call_operand.vmem [shape: s32[1,512], index: 0, kind: input, shape index: {}]
  %s1 = inlined_call_operand.vmem [shape: s32[1,512], index: 1, kind: input, shape index: {}]
  %s2 = inlined_call_operand.vmem [shape: f32[32,10], index: 2, kind: input, shape index: {}]
  %s3 = inlined_call_operand.vmem [shape: f32[32,21], index: 3, kind: input, shape index: {}]
  %s4 = inlined_call_operand.vmem [shape: f32[32,1], index: 4, kind: input, shape index: {}]
  %s5 = inlined_call_operand.hbm [shape: f32[1,512], index: 5, kind: output, shape index: {}]
  %s6 = sld [smem:[#allocation0]]
  $region53: #{tpu_custom_call.1} parent=0
    _
  %s8 = ssub.s32 1, %s6
  %s9 = scalar_select 0, %s8, %s6
  $region1: #{tpu_custom_call.1} parent=0
    #allocation2 [shape = 'u8[2048]{0}', space=vmem, size = 0x800, scoped, tag = 'output window, operand 0']
    #allocation3 [shape = 's32[2]{0}', space=sflag, size = 0x8, scoped, tag = 'scoped memory for tpu_custom_call.1']
    %10 = vsyncpa [#allocation3], 0
    %s11 = scalar_lea.sflag [#allocation3], 1
    %12 = vsyncpa %s11, 0
    loop: start=0, step=1, limit=4
    $region2: #{tpu_custom_call.1} parent=1 // loop_pre_header
      _
    $region3: #{tpu_custom_call.1} parent=1 // loop_header
      %s14 = sphi 0, %s18
      %p15 = scmp.ge.s32.totalorder %s14, 4
      %s24 = sphi 0, %s26
      %s27 = sphi 0, %s24
      %s28 = sphi 0, %s27
      %s44 = sphi 0, %s28
      %s50 = sphi 0, %s52
      %s53 = sphi 0, %s50
      %s54 = sphi 0, %s53
      %s70 = sphi 0, %s54
      %s74 = sphi 0, %s74
      %s76 = sphi 0, %s74
      %s77 = sphi 0, %s76
      %s91 = sphi 0, %s77
      %s95 = sphi 0, %s95
      %s97 = sphi 0, %s95
      %s98 = sphi 0, %s97
      %s112 = sphi 0, %s98
      %s116 = sphi 0, %s116
      %s118 = sphi 0, %s116
      %s119 = sphi 0, %s118
      %s133 = sphi 0, %s119
      %s139 = sphi 0, %s141
      %s142 = sphi 0, %s139
      %s143 = sphi 0, %s142
      %s159 = sphi 0, %s143
    $region4: #{tpu_custom_call.1} parent=1 // loop_header_branch
      %17 = sbr.rel (%p15) target = $region8
    $region5: #{tpu_custom_call.1} parent=1 // loop_body
      %s19 = ssub.s32 %s14, 1
      %s20 = ssub.s32 %s14, 2
      %s21 = sadd.s32 %s14, 1
      %s22 = ssub.s32 %s14, %s21
      %p23 = scmp.eq.s32.totalorder %s22, 0
      %s25 = sadd.s32 %s24, 1
      %s26 = scalar_select %p23, %s24, %s25
      %p29 = pneg %p23
      %p30 = scmp.eq.s32.totalorder %s14, 1
      %p31 = por %p29, %p30
      %p32 = scmp.ne.s32.totalorder %s24, %s27
      %p33 = scmp.eq.s32.totalorder %s14, 0
      %p34 = por %p32, %p33
      %p35 = scmp.ne.s32.totalorder %s24, %s27
      %p36 = scmp.eq.s32.totalorder %s19, 1
      %p37 = por %p35, %p36
      %p38 = scmp.ne.s32.totalorder %s27, %s28
      %p39 = scmp.eq.s32.totalorder %s19, 0
      %p40 = por %p38, %p39
      %p41 = scmp.ne.s32.totalorder %s27, %s28
      %p42 = scmp.eq.s32.totalorder %s20, 1
      %p43 = por %p41, %p42
      %p45 = scmp.ne.s32.totalorder %s28, %s44
      %p46 = scmp.eq.s32.totalorder %s20, 0
      %p47 = por %p45, %p46
      %s48 = ssub.s32 %s14, %s21
      %p49 = scmp.eq.s32.totalorder %s48, 0
      %s51 = sadd.s32 %s50, 1
      %s52 = scalar_select %p49, %s50, %s51
      %p55 = pneg %p49
      %p56 = scmp.eq.s32.totalorder %s14, 1
      %p57 = por %p55, %p56
      %p58 = scmp.ne.s32.totalorder %s50, %s53
      %p59 = scmp.eq.s32.totalorder %s14, 0
      %p60 = por %p58, %p59
      %p61 = scmp.ne.s32.totalorder %s50, %s53
      %p62 = scmp.eq.s32.totalorder %s19, 1
      %p63 = por %p61, %p62
      %p64 = scmp.ne.s32.totalorder %s53, %s54
      %p65 = scmp.eq.s32.totalorder %s19, 0
      %p66 = por %p64, %p65
      %p67 = scmp.ne.s32.totalorder %s53, %s54
      %p68 = scmp.eq.s32.totalorder %s20, 1
      %p69 = por %p67, %p68
      %p71 = scmp.ne.s32.totalorder %s54, %s70
      %p72 = scmp.eq.s32.totalorder %s20, 0
      %p73 = por %p71, %p72
      %s75 = sadd.s32 %s74, 1
      %p78 = scmp.eq.s32.totalorder %s14, 1
      %p79 = scmp.ne.s32.totalorder %s74, %s76
      %p80 = scmp.eq.s32.totalorder %s14, 0
      %p81 = por %p79, %p80
      %p82 = scmp.ne.s32.totalorder %s74, %s76
      %p83 = scmp.eq.s32.totalorder %s19, 1
      %p84 = por %p82, %p83
      %p85 = scmp.ne.s32.totalorder %s76, %s77
      %p86 = scmp.eq.s32.totalorder %s19, 0
      %p87 = por %p85, %p86
      %p88 = scmp.ne.s32.totalorder %s76, %s77
      %p89 = scmp.eq.s32.totalorder %s20, 1
      %p90 = por %p88, %p89
      %p92 = scmp.ne.s32.totalorder %s77, %s91
      %p93 = scmp.eq.s32.totalorder %s20, 0
      %p94 = por %p92, %p93
      %s96 = sadd.s32 %s95, 1
      %p99 = scmp.eq.s32.totalorder %s14, 1
      %p100 = scmp.ne.s32.totalorder %s95, %s97
      %p101 = scmp.eq.s32.totalorder %s14, 0
      %p102 = por %p100, %p101
      %p103 = scmp.ne.s32.totalorder %s95, %s97
      %p104 = scmp.eq.s32.totalorder %s19, 1
      %p105 = por %p103, %p104
      %p106 = scmp.ne.s32.totalorder %s97, %s98
      %p107 = scmp.eq.s32.totalorder %s19, 0
      %p108 = por %p106, %p107
      %p109 = scmp.ne.s32.totalorder %s97, %s98
      %p110 = scmp.eq.s32.totalorder %s20, 1
      %p111 = por %p109, %p110
      %p113 = scmp.ne.s32.totalorder %s98, %s112
      %p114 = scmp.eq.s32.totalorder %s20, 0
      %p115 = por %p113, %p114
      %s117 = sadd.s32 %s116, 1
      %p120 = scmp.eq.s32.totalorder %s14, 1
      %p121 = scmp.ne.s32.totalorder %s116, %s118
      %p122 = scmp.eq.s32.totalorder %s14, 0
      %p123 = por %p121, %p122
      %p124 = scmp.ne.s32.totalorder %s116, %s118
      %p125 = scmp.eq.s32.totalorder %s19, 1
      %p126 = por %p124, %p125
      %p127 = scmp.ne.s32.totalorder %s118, %s119
      %p128 = scmp.eq.s32.totalorder %s19, 0
      %p129 = por %p127, %p128
      %p130 = scmp.ne.s32.totalorder %s118, %s119
      %p131 = scmp.eq.s32.totalorder %s20, 1
      %p132 = por %p130, %p131
      %p134 = scmp.ne.s32.totalorder %s119, %s133
      %p135 = scmp.eq.s32.totalorder %s20, 0
      %p136 = por %p134, %p135
      %s137 = ssub.s32 %s14, %s21
      %p138 = scmp.eq.s32.totalorder %s137, 0
      %s140 = sadd.s32 %s139, 1
      %s141 = scalar_select %p138, %s139, %s140
      %p144 = pneg %p138
      %p145 = scmp.eq.s32.totalorder %s14, 1
      %p146 = por %p144, %p145
      %p147 = scmp.ne.s32.totalorder %s139, %s142
      %p148 = scmp.eq.s32.totalorder %s14, 0
      %p149 = por %p147, %p148
      %p150 = scmp.ne.s32.totalorder %s139, %s142
      %p151 = scmp.eq.s32.totalorder %s19, 1
      %p152 = por %p150, %p151
      %p153 = scmp.ne.s32.totalorder %s142, %s143
      %p154 = scmp.eq.s32.totalorder %s19, 0
      %p155 = por %p153, %p154
      %p156 = scmp.ne.s32.totalorder %s142, %s143
      %p157 = scmp.eq.s32.totalorder %s20, 1
      %p158 = por %p156, %p157
      %p160 = scmp.ne.s32.totalorder %s143, %s159
      %p161 = scmp.eq.s32.totalorder %s20, 0
      %p162 = por %p160, %p161
      %p163 = scmp.le.s32.totalorder 1, %s14
      %p164 = scmp.lt.s32.totalorder %s14, 3
      %p165 = pnand %p163, %p164
      %p166 = pneg %p165
      // Predicated region
      $region9: #{tpu_custom_call.1} parent=5 // pred_check
        _
      $region10: #{tpu_custom_call.1} parent=5 // pred_check_branch
        %168 = sbr.rel (%p165) target = $region12
      $region11: #{tpu_custom_call.1} parent=5 // pred_region
        %s169 = ssub.s32 %s14, 1
        // Predicated region
        $region13: #{tpu_custom_call.1} parent=11 // pred_check
          %p170 = pneg %p87
        $region14: #{tpu_custom_call.1} parent=11 // pred_check_branch
          %172 = sbr.rel (%p170) target = $region16
        $region15: #{tpu_custom_call.1} parent=11 // pred_region
          _
        $region16: #{tpu_custom_call.1} parent=11 // pred_fallthru
          _
        // Predicated region
        $region17: #{tpu_custom_call.1} parent=11 // pred_check
          %p173 = pneg %p108
        $region18: #{tpu_custom_call.1} parent=11 // pred_check_branch
          %175 = sbr.rel (%p173) target = $region20
        $region19: #{tpu_custom_call.1} parent=11 // pred_region
          _
        $region20: #{tpu_custom_call.1} parent=11 // pred_fallthru
          _
        // Predicated region
        $region21: #{tpu_custom_call.1} parent=11 // pred_check
          %p176 = pneg %p129
        $region22: #{tpu_custom_call.1} parent=11 // pred_check_branch
          %178 = sbr.rel (%p176) target = $region24
        $region23: #{tpu_custom_call.1} parent=11 // pred_region
          _
        $region24: #{tpu_custom_call.1} parent=11 // pred_fallthru
          _
      $region12: #{tpu_custom_call.1} parent=5 // pred_fallthru
        _
      %p179 = scmp.lt.s32.totalorder %s14, 2
      // Predicated region
      $region25: #{tpu_custom_call.1} parent=5 // pred_check
        %p180 = pneg %p179
      $region26: #{tpu_custom_call.1} parent=5 // pred_check_branch
        %182 = sbr.rel (%p180) target = $region28
      $region27: #{tpu_custom_call.1} parent=5 // pred_region
        // Predicated region
        $region29: #{tpu_custom_call.1} parent=27 // pred_check
          %p183 = pneg %p34
        $region30: #{tpu_custom_call.1} parent=27 // pred_check_branch
          %185 = sbr.rel (%p183) target = $region32
        $region31: #{tpu_custom_call.1} parent=27 // pred_region
          %s186 = smul.u32 2, %s14
          %p187 = scmp.lt.s32.totalorder %s186, 3
          %s188 = scalar_select %p187, %s186, 3
          %s189 = scalar_lea.vmem %s0, %s188
          %s190 = smul.u32 2, %s14
        $region32: #{tpu_custom_call.1} parent=27 // pred_fallthru
          _
        // Predicated region
        $region33: #{tpu_custom_call.1} parent=27 // pred_check
          %p191 = pneg %p60
        $region34: #{tpu_custom_call.1} parent=27 // pred_check_branch
          %193 = sbr.rel (%p191) target = $region36
        $region35: #{tpu_custom_call.1} parent=27 // pred_region
          %s194 = smul.u32 2, %s14
          %p195 = scmp.lt.s32.totalorder %s194, 3
          %s196 = scalar_select %p195, %s194, 3
          %s197 = scalar_lea.vmem %s1, %s196
          %s198 = smul.u32 2, %s14
        $region36: #{tpu_custom_call.1} parent=27 // pred_fallthru
          _
      $region28: #{tpu_custom_call.1} parent=5 // pred_fallthru
        _
      %p199 = scmp.le.s32.totalorder 1, %s14
      %p200 = scmp.lt.s32.totalorder %s14, 3
      %p201 = pnand %p199, %p200
      %p202 = pneg %p201
      // Predicated region
      $region37: #{tpu_custom_call.1} parent=5 // pred_check
        _
      $region38: #{tpu_custom_call.1} parent=5 // pred_check_branch
        %204 = sbr.rel (%p201) target = $region40
      $region39: #{tpu_custom_call.1} parent=5 // pred_region
        %s205 = ssub.s32 %s14, 1
        %s206 = smul.u32 2, %s19
        %p207 = scmp.lt.s32.totalorder %s206, 3
        %s208 = scalar_select %p207, %s206, 3
        %s209 = scalar_lea.vmem %s0, %s208
        %p210 = pneg %p40
        %p211 = pneg %p37
        %s212 = smul.u32 2, %s19
        %p213 = scmp.lt.s32.totalorder %s212, 3
        %s214 = scalar_select %p213, %s212, 3
        %s215 = scalar_lea.vmem %s1, %s214
        %p216 = pneg %p66
        %p217 = pneg %p63
        %p218 = pneg %p87
        %p219 = pneg %p84
        %p220 = pneg %p108
        %p221 = pneg %p105
        %p222 = pneg %p129
        %p223 = pneg %p126
        %p224 = pneg %p155
        %p225 = pneg %p152
        %s226 = sand.u32 %s142, 1
        %s227 = scalar_lea.sflag [#allocation3], %s226
        %s228 = sand.u32 %s142, 1
        %s229 = smul.addr %s228, 2
        %s230 = scalar_lea.vmem [#allocation2], %s229
        %s231 = smul.u32 2, %s19
        %p232 = scmp.lt.s32.totalorder %s231, 3
        %s233 = scalar_select %p232, %s231, 3
        %s234 = scalar_lea.vmem %s0, %s233
        %s235 = smul.u32 2, %s19
        %s236 = smul.u32 2, %s19
        %p237 = scmp.lt.s32.totalorder %s236, 3
        %s238 = scalar_select %p237, %s236, 3
        %s239 = scalar_lea.vmem %s1, %s238
        %s240 = smul.u32 2, %s19
        %s241 = smul.u32 2, %s19
        %v242 = vlaneseq
        %v243 = vshrl.u32 %v242, 7
        %v244 = vadd.s32 %v243, 8
        %v245 = vld [vmem:[%s234] sm:$0x3]
        %v246 = vlaneseq
        %v247 = vshrl.u32 %v246, 7
        %v248 = vsub.s32 0, %v247
        %v249 = vrot.slane %v245, %v248
        %v250 = vlaneseq
        %v251 = vshrl.u32 %v250, 7
        %v252 = vsub.s32 1, %v251
        %v253 = vrot.slane %v245, %v252
        %vm254 = vcmp.eq.s32.totalorder %v243, %v249
        %vm255 = vcmp.eq.s32.totalorder %v243, %v253
        %vm256 = vcmp.eq.s32.totalorder %v244, %v249
        %vm257 = vcmp.eq.s32.totalorder %v244, %v253
        %v258 = vsel %vm254, 1.0, 0.0
        %v259 = vsel %vm255, 1.0, 0.0
        %v260 = vsel %vm256, 1.0, 0.0
        %v261 = vsel %vm257, 1.0, 0.0
        %v262 = vadd.s32 %v243, 16
        %v263 = vld [vmem:[%s239] sm:$0x3]
        %v264 = vlaneseq
        %v265 = vshrl.u32 %v264, 7
        %v266 = vsub.s32 0, %v265
        %v267 = vrot.slane %v263, %v266
        %v268 = vlaneseq
        %v269 = vshrl.u32 %v268, 7
        %v270 = vsub.s32 1, %v269
        %v271 = vrot.slane %v263, %v270
        %vm272 = vcmp.eq.s32.totalorder %v243, %v267
        %vm273 = vcmp.eq.s32.totalorder %v243, %v271
        %vm274 = vcmp.eq.s32.totalorder %v244, %v267
        %vm275 = vcmp.eq.s32.totalorder %v244, %v271
        %vm276 = vcmp.eq.s32.totalorder %v262, %v267
        %vm277 = vcmp.eq.s32.totalorder %v262, %v271
        %v278 = vsel %vm272, 1.0, 0.0
        %v279 = vsel %vm273, 1.0, 0.0
        %v280 = vsel %vm274, 1.0, 0.0
        %v281 = vsel %vm275, 1.0, 0.0
        %v282 = vsel %vm276, 1.0, 0.0
        %v283 = vsel %vm277, 1.0, 0.0
        %v284 = vld [vmem:[%s2] sm:$0xff]
        %v285 = vld [vmem:[%s2 + $0x8] sm:$0xff]
        %v286 = vld [vmem:[%s2 + $0x10] sm:$0xff]
        %v287 = vld [vmem:[%s2 + $0x18] sm:$0xff]
        %vm288 = vcmask 80896
        %v290 = vsel %vm288, %v284, 0
        %v293 = vsel %vm288, %v285, 0
        %v296 = vsel %vm288, %v286, 0
        %v299 = vsel %vm288, %v287, 0
        %vm301 = vcmask 1041408
        %v303 = vsel %vm301, %v260, 0
        %v306 = vsel %vm301, %v261, 0
        %308 = vmatprep.subr.mxu0 %v259
        %309 = vmatpush1.msra.mxu0 %v258
        %310 = vmatprep.subr.mxu0 %v306
        %311 = vmatpush1.msra.mxu0 %v303
        %312 = vmatprep.subr.mxu0 0.0
        %313 = vmatpush1.msra.mxu0 0.0
        %314 = vmatprep.subr.mxu0 0.0
        %315 = vmatpush1.msra.mxu0 0.0
        %316 = vmatprep.subr.mxu0 0.0
        %317 = vmatpush1.msra.mxu0 0.0
        %318 = vmatprep.subr.mxu0 0.0
        %319 = vmatpush1.msra.mxu0 0.0
        %320 = vmatprep.subr.mxu0 0.0
        %321 = vmatpush1.msra.mxu0 0.0
        %322 = vmatprep.subr.mxu0 0.0
        %323 = vmatpush1.msra.mxu0 0.0
        %324 = vmatprep.subr.mxu0 0.0
        %325 = vmatpush1.msra.mxu0 0.0
        %326 = vmatprep.subr.mxu0 0.0
        %327 = vmatpush1.msra.mxu0 0.0
        %328 = vmatprep.subr.mxu0 0.0
        %329 = vmatpush1.msra.mxu0 0.0
        %330 = vmatprep.subr.mxu0 0.0
        %331 = vmatpush1.msra.mxu0 0.0
        %332 = vmatprep.subr.mxu0 0.0
        %333 = vmatpush1.msra.mxu0 0.0
        %334 = vmatprep.subr.mxu0 0.0
        %335 = vmatpush1.msra.mxu0 0.0
        %336 = vmatprep.subr.mxu0 0.0
        %337 = vmatpush1.msra.mxu0 0.0
        %338 = vmatprep.subr.mxu0 0.0
        %339 = vmatpush1.msra.mxu0 0.0
        %340 = vmatprep.subr.mxu0 0.0
        %341 = vmatpush1.msra.mxu0 0.0
        %342 = vmatprep.subr.mxu0 0.0
        %343 = vmatpush1.msra.mxu0 0.0
        %344 = vmatprep.subr.mxu0 0.0
        %345 = vmatpush1.msra.mxu0 0.0
        %346 = vmatprep.subr.mxu0 0.0
        %347 = vmatpush1.msra.mxu0 0.0
        %348 = vmatprep.subr.mxu0 0.0
        %349 = vmatpush1.msra.mxu0 0.0
        %350 = vmatprep.subr.mxu0 0.0
        %351 = vmatpush1.msra.mxu0 0.0
        %352 = vmatprep.subr.mxu0 0.0
        %353 = vmatpush1.msra.mxu0 0.0
        %354 = vmatprep.subr.mxu0 0.0
        %355 = vmatpush1.msra.mxu0 0.0
        %356 = vmatprep.subr.mxu0 0.0
        %357 = vmatpush1.msra.mxu0 0.0
        %358 = vmatprep.subr.mxu0 0.0
        %359 = vmatpush1.msra.mxu0 0.0
        %360 = vmatprep.subr.mxu0 0.0
        %361 = vmatpush1.msra.mxu0 0.0
        %362 = vmatprep.subr.mxu0 0.0
        %363 = vmatpush1.msra.mxu0 0.0
        %364 = vmatprep.subr.mxu0 0.0
        %365 = vmatpush1.msra.mxu0 0.0
        %366 = vmatprep.subr.mxu0 0.0
        %367 = vmatpush1.msra.mxu0 0.0
        %368 = vmatprep.subr.mxu0 0.0
        %369 = vmatpush1.msra.mxu0 0.0
        %370 = vmatprep.subr.mxu0 0.0
        %371 = vmatpush1.msra.mxu0 0.0
        %372 = vmatprep.mubr.f32.mxu0 0.0
        %373 = vmatmul.mubr.f32.gmra.mrb[0].mxu0 %v290
        %v374 = vpop.f32.mrb[0].mxu0
        %v375 = vadd.f32 0.0, %v374
        %v376 = vpop.f32.mrb[0].mxu0
        %v377 = vadd.f32 0.0, %v376
        %378 = vmatprep.mubr.f32.mxu0 0.0
        %379 = vmatmul.mubr.f32.gmra.mrb[0].mxu0 %v293
        %v380 = vpop.f32.mrb[0].mxu0
        %v381 = vadd.f32 0.0, %v380
        %v382 = vpop.f32.mrb[0].mxu0
        %v383 = vadd.f32 0.0, %v382
        %384 = vmatprep.mubr.f32.mxu0 0.0
        %385 = vmatmul.mubr.f32.gmra.mrb[0].mxu0 %v296
        %v386 = vpop.f32.mrb[0].mxu0
        %v387 = vadd.f32 0.0, %v386
        %v388 = vpop.f32.mrb[0].mxu0
        %v389 = vadd.f32 0.0, %v388
        %390 = vmatprep.mubr.f32.mxu0 0.0
        %391 = vmatmul.mubr.f32.gmra.mrb[0].mxu0 %v299
        %v392 = vpop.f32.mrb[0].mxu0
        %v393 = vadd.f32 0.0, %v392
        %v394 = vpop.f32.mrb[0].mxu0
        %v395 = vadd.f32 0.0, %v394
        %396 = vdwg.mxu0
        %v397 = vld [vmem:[%s3] sm:$0xff]
        %v398 = vld [vmem:[%s3 + $0x8] sm:$0xff]
        %v399 = vld [vmem:[%s3 + $0x10] sm:$0xff]
        %v400 = vld [vmem:[%s3 + $0x18] sm:$0xff]
        %vm401 = vcmask 171008
        %v403 = vsel %vm401, %v397, 0
        %v406 = vsel %vm401, %v398, 0
        %v409 = vsel %vm401, %v399, 0
        %v412 = vsel %vm401, %v400, 0
        %vm414 = vcmask 1044480
        %v416 = vsel %vm414, %v282, 0
        %v419 = vsel %vm414, %v283, 0
        %421 = vmatprep.subr.mxu0 %v279
        %422 = vmatpush1.msra.mxu0 %v278
        %423 = vmatprep.subr.mxu0 %v281
        %424 = vmatpush1.msra.mxu0 %v280
        %425 = vmatprep.subr.mxu0 %v419
        %426 = vmatpush1.msra.mxu0 %v416
        %427 = vmatprep.subr.mxu0 0.0
        %428 = vmatpush1.msra.mxu0 0.0
        %429 = vmatprep.subr.mxu0 0.0
        %430 = vmatpush1.msra.mxu0 0.0
        %431 = vmatprep.subr.mxu0 0.0
        %432 = vmatpush1.msra.mxu0 0.0
        %433 = vmatprep.subr.mxu0 0.0
        %434 = vmatpush1.msra.mxu0 0.0
        %435 = vmatprep.subr.mxu0 0.0
        %436 = vmatpush1.msra.mxu0 0.0
        %437 = vmatprep.subr.mxu0 0.0
        %438 = vmatpush1.msra.mxu0 0.0
        %439 = vmatprep.subr.mxu0 0.0
        %440 = vmatpush1.msra.mxu0 0.0
        %441 = vmatprep.subr.mxu0 0.0
        %442 = vmatpush1.msra.mxu0 0.0
        %443 = vmatprep.subr.mxu0 0.0
        %444 = vmatpush1.msra.mxu0 0.0
        %445 = vmatprep.subr.mxu0 0.0
        %446 = vmatpush1.msra.mxu0 0.0
        %447 = vmatprep.subr.mxu0 0.0
        %448 = vmatpush1.msra.mxu0 0.0
        %449 = vmatprep.subr.mxu0 0.0
        %450 = vmatpush1.msra.mxu0 0.0
        %451 = vmatprep.subr.mxu0 0.0
        %452 = vmatpush1.msra.mxu0 0.0
        %453 = vmatprep.subr.mxu0 0.0
        %454 = vmatpush1.msra.mxu0 0.0
        %455 = vmatprep.subr.mxu0 0.0
        %456 = vmatpush1.msra.mxu0 0.0
        %457 = vmatprep.subr.mxu0 0.0
        %458 = vmatpush1.msra.mxu0 0.0
        %459 = vmatprep.subr.mxu0 0.0
        %460 = vmatpush1.msra.mxu0 0.0
        %461 = vmatprep.subr.mxu0 0.0
        %462 = vmatpush1.msra.mxu0 0.0
        %463 = vmatprep.subr.mxu0 0.0
        %464 = vmatpush1.msra.mxu0 0.0
        %465 = vmatprep.subr.mxu0 0.0
        %466 = vmatpush1.msra.mxu0 0.0
        %467 = vmatprep.subr.mxu0 0.0
        %468 = vmatpush1.msra.mxu0 0.0
        %469 = vmatprep.subr.mxu0 0.0
        %470 = vmatpush1.msra.mxu0 0.0
        %471 = vmatprep.subr.mxu0 0.0
        %472 = vmatpush1.msra.mxu0 0.0
        %473 = vmatprep.subr.mxu0 0.0
        %474 = vmatpush1.msra.mxu0 0.0
        %475 = vmatprep.subr.mxu0 0.0
        %476 = vmatpush1.msra.mxu0 0.0
        %477 = vmatprep.subr.mxu0 0.0
        %478 = vmatpush1.msra.mxu0 0.0
        %479 = vmatprep.subr.mxu0 0.0
        %480 = vmatpush1.msra.mxu0 0.0
        %481 = vmatprep.subr.mxu0 0.0
        %482 = vmatpush1.msra.mxu0 0.0
        %483 = vmatprep.subr.mxu0 0.0
        %484 = vmatpush1.msra.mxu0 0.0
        %485 = vmatprep.mubr.f32.mxu0 0.0
        %486 = vmatmul.mubr.f32.gmra.mrb[0].mxu0 %v403
        %v487 = vpop.f32.mrb[0].mxu0
        %v488 = vadd.f32 0.0, %v487
        %v489 = vpop.f32.mrb[0].mxu0
        %v490 = vadd.f32 0.0, %v489
        %491 = vmatprep.mubr.f32.mxu0 0.0
        %492 = vmatmul.mubr.f32.gmra.mrb[0].mxu0 %v406
        %v493 = vpop.f32.mrb[0].mxu0
        %v494 = vadd.f32 0.0, %v493
        %v495 = vpop.f32.mrb[0].mxu0
        %v496 = vadd.f32 0.0, %v495
        %497 = vmatprep.mubr.f32.mxu0 0.0
        %498 = vmatmul.mubr.f32.gmra.mrb[0].mxu0 %v409
        %v499 = vpop.f32.mrb[0].mxu0
        %v500 = vadd.f32 0.0, %v499
        %v501 = vpop.f32.mrb[0].mxu0
        %v502 = vadd.f32 0.0, %v501
        %503 = vmatprep.mubr.f32.mxu0 0.0
        %504 = vmatmul.mubr.f32.gmra.mrb[0].mxu0 %v412
        %v505 = vpop.f32.mrb[0].mxu0
        %v506 = vadd.f32 0.0, %v505
        %v507 = vpop.f32.mrb[0].mxu0
        %v508 = vadd.f32 0.0, %v507
        %509 = vdwg.mxu0
        %v510 = vmul.f32 %v375, %v488
        %v511 = vmul.f32 %v377, %v490
        %v512 = vmul.f32 %v381, %v494
        %v513 = vmul.f32 %v383, %v496
        %v514 = vmul.f32 %v387, %v500
        %v515 = vmul.f32 %v389, %v502
        %v516 = vmul.f32 %v393, %v506
        %v517 = vmul.f32 %v395, %v508
        %v518 = vld [vmem:[%s4] sm:$0xff]
        %v519 = vld [vmem:[%s4 + $0x8] sm:$0xff]
        %v520 = vld [vmem:[%s4 + $0x10] sm:$0xff]
        %v521 = vld [vmem:[%s4 + $0x18] sm:$0xff]
        %523 = vset.pattern.permute.xlu0 0
        %524 = vperm.xlu0 %523, %v518
        %v525 = vpop.permute.xlu0 %524
        %528 = vset.pattern.permute.xlu0 0
        %529 = vperm.xlu0 %528, %v519
        %v530 = vpop.permute.xlu0 %529
        %533 = vset.pattern.permute.xlu0 0
        %534 = vperm.xlu0 %533, %v520
        %v535 = vpop.permute.xlu0 %534
        %538 = vset.pattern.permute.xlu0 0
        %539 = vperm.xlu0 %538, %v521
        %v540 = vpop.permute.xlu0 %539
        %v542 = vmul.f32 %v510, %v525
        %v543 = vmul.f32 %v511, %v525
        %v544 = vmul.f32 %v512, %v530
        %v545 = vmul.f32 %v513, %v530
        %v546 = vmul.f32 %v514, %v535
        %v547 = vmul.f32 %v515, %v535
        %v548 = vmul.f32 %v516, %v540
        %v549 = vmul.f32 %v517, %v540
        %v550 = vadd.f32 %v542, %v544
        %v551 = vadd.f32 %v550, %v546
        %v552 = vadd.f32 %v551, %v548
        %v553 = vrot.slane %v552, 4
        %v554 = vadd.f32 %v552, %v553
        %v555 = vrot.slane %v554, 2
        %v556 = vadd.f32 %v554, %v555
        %v557 = vrot.slane %v556, 1
        %v558 = vadd.f32 %v556, %v557
        %v559 = vadd.f32 %v543, %v545
        %v560 = vadd.f32 %v559, %v547
        %v561 = vadd.f32 %v560, %v549
        %v562 = vrot.slane %v561, 4
        %v563 = vadd.f32 %v561, %v562
        %v564 = vrot.slane %v563, 2
        %v565 = vadd.f32 %v563, %v564
        %v566 = vrot.slane %v565, 1
        %v567 = vadd.f32 %v565, %v566
        %v570 = vcombine.low %v558, %v567
        %v572 = vunpack.c.l.s4 1966171168
        %v573 = vunpack.c.0.s8 %v572
        %v574 = vlaneseq
        %v575 = vshrl.u32 %v574, 7
        %v576 = vsub.s32 %v573, %v575
        %v577 = vrot.slane %v570, %v576
        %v579 = vunpack.c.l.s4 1966171168
        %v580 = vunpack.c.0.s8 %v579
        %v581 = vlaneseq
        %v582 = vshrl.u32 %v581, 7
        %v583 = vsub.s32 %v580, %v582
        %v584 = vrot.slane %v577, %v583
        %v586 = vlaneseq
        %vm587 = vcmp.ge.s32.totalorder %v586, 0
        %vm588 = vcmp.lt.s32.totalorder %v586, 256
        %vm589 = vmand %vm587, %vm588
        %590 = vst.msk [vmem:[%s230] sm:$0x3] %vm589, %v584
        %s591 = sand.u32 %s142, 1
        %s592 = scalar_lea.sflag [#allocation3], %s591
        %s593 = sand.u32 %s142, 1
        %s594 = smul.addr %s593, 2
        %s595 = scalar_lea.vmem [#allocation2], %s594
        // Predicated region
        $region41: #{tpu_custom_call.1} parent=39 // pred_check
          %p596 = pneg %p152
        $region42: #{tpu_custom_call.1} parent=39 // pred_check_branch
          %598 = sbr.rel (%p596) target = $region44
        $region43: #{tpu_custom_call.1} parent=39 // pred_region
          %s599 = smul.u32 2, %s19
          %s601 = ssub.s32 32, 32
          %602 = vsyncadd %s592, %s601
          %s603 = smul.addr %s599, 16
          %s604 = scalar_lea.hbm %s5, %s603
          %s606 = sshll.u32 %s595, 4
          %s607 = int_to_ptr.vmem [resolvable:$true] %s606
          %609 = dma.vmem_to_hbm [thread:$0]  %s607, 32, %s604, %s592
        $region44: #{tpu_custom_call.1} parent=39 // pred_fallthru
          _
      $region40: #{tpu_custom_call.1} parent=5 // pred_fallthru
        _
      %p610 = scmp.le.s32.totalorder 2, %s14
      // Predicated region
      $region45: #{tpu_custom_call.1} parent=5 // pred_check
        %p611 = pneg %p610
      $region46: #{tpu_custom_call.1} parent=5 // pred_check_branch
        %613 = sbr.rel (%p611) target = $region48
      $region47: #{tpu_custom_call.1} parent=5 // pred_region
        %s614 = ssub.s32 %s14, 2
        // Predicated region
        $region49: #{tpu_custom_call.1} parent=47 // pred_check
          %p615 = pneg %p158
        $region50: #{tpu_custom_call.1} parent=47 // pred_check_branch
          %617 = sbr.rel (%p615) target = $region52
        $region51: #{tpu_custom_call.1} parent=47 // pred_region
          %s618 = sand.u32 %s143, 1
          %s619 = scalar_lea.sflag [#allocation3], %s618
          %s620 = sand.u32 %s143, 1
          %s621 = smul.addr %s620, 2
          %s622 = scalar_lea.vmem [#allocation2], %s621
          %623 = dma.done %s619, 32
        $region52: #{tpu_custom_call.1} parent=47 // pred_fallthru
          _
      $region48: #{tpu_custom_call.1} parent=5 // pred_fallthru
        _
    $region6: #{tpu_custom_call.1} parent=1 // loop_footer
      %s18 = sadd.s32 1, %s14
    $region7: #{tpu_custom_call.1} parent=1 // loop_footer_branch
      %13 = sbr.rel target = $region3
    $region8: #{tpu_custom_call.1} parent=1 // loop_exit
      _
    %624 = vsyncpa [#allocation3], 1
    %s625 = scalar_lea.sflag [#allocation3], 1
    %626 = vsyncpa %s625, 1

</llo_original>
